<compile_context>
chip_gen: v5e
topology: v5e:2x2
jax: 0.10.0
libtpu: 0.0.40
codegen_flags: <defaults>
</compile_context>

<pallas_src>
import functools
import math

import jax
import jax.numpy as jnp
from jax.experimental import pallas as pl
from jax.experimental.pallas import tpu as pltpu


def _round_up(v, m):
    return ((v + m - 1) // m) * m


def _pad2(m, rows, cols):
    return jnp.pad(m, ((0, rows - m.shape[0]), (0, cols - m.shape[1])))


def _vmem_limit_bytes():
    cap = 128 * 1024 * 1024
    try:
        cap = int(getattr(pltpu.get_tpu_info(), "vmem_capacity_bytes", cap))
    except Exception:
        pass
    # 32 MiB headroom below physical VMEM (v7x: 64 MiB -> 32; v5e/v6e: 128 -> 96).
    return max(16 * 1024 * 1024, min(cap - 32 * 1024 * 1024, 96 * 1024 * 1024))


def _sage_agg_kernel(relu, tk, hn_full, a_ref, hn_ref, s_ref, dinv_ref,
                     out_ref, acc_ref):
    """One SAGEConv('mean') layer in output space over a (row-tile, A-col-tile) grid.

    grid = (i, k); k is the reduction over adjacency column tiles (last, arbitrary).
      a_ref    : (TM, TK)                    int8 {0,1} adjacency tile
      hn_ref   : (TK, Fout) or (Npad, Fout)  bf16 precomputed H @ W_neigh
      s_ref    : (TM, Fout)                  f32 precomputed H @ W_self + b
      dinv_ref : (TM, 1)                     f32 1/deg (row scale of the mean)
      out_ref  : (TM, Fout)                  output tile (resident across k)
      acc_ref  : (TM, Fout)                  f32 accumulator for A @ Hn
    """
    k = pl.program_id(1)

    @pl.when(k == 0)
    def _init():
        acc_ref[...] = jnp.zeros_like(acc_ref)

    # {0,1} int8 -> bf16 for the MXU (cheap VPU converts, hidden under the A DMA).
    a_tile = a_ref[...].astype(jnp.float32).astype(jnp.bfloat16)
    if hn_full:
        start = pl.multiple_of(k * tk, tk)
        hn = hn_ref[pl.ds(start, tk), :]
    else:
        hn = hn_ref[...]
    acc_ref[...] += jnp.dot(a_tile, hn, preferred_element_type=jnp.float32)

    @pl.when(k == pl.num_programs(1) - 1)
    def _finalize():
        h = acc_ref[...] * dinv_ref[...] + s_ref[...]
        if relu:
            h = jnp.maximum(h, 0.0)
        out_ref[...] = h.astype(out_ref.dtype)


def _sage_agg_layer(a_i8, hn, s, dinv, *, relu, tm, tk, vmem_limit):
    n_pad = a_i8.shape[0]
    fout = hn.shape[1]
    grid = (n_pad // tm, n_pad // tk)

    # Keep the whole Hn resident in VMEM when small (no re-stream per row tile);
    # otherwise stream (tk, fout) tiles along the reduction axis.
    hn_full = 2 * n_pad * fout * hn.dtype.itemsize <= 8 * 1024 * 1024
    if hn_full:
        hn_spec = pl.BlockSpec((n_pad, fout), lambda i, k: (0, 0))
    else:
        hn_spec = pl.BlockSpec((tk, fout), lambda i, k: (k, 0))

    kernel = functools.partial(_sage_agg_kernel, relu, tk, hn_full)
    return pl.pallas_call(
        kernel,
        out_shape=jax.ShapeDtypeStruct((n_pad, fout), jnp.float32),
        grid_spec=pltpu.PrefetchScalarGridSpec(
            num_scalar_prefetch=0,
            grid=grid,
            in_specs=[
                # TODO(synk): if a profile still shows exposed A DMA at these tiles,
                # add pipeline_mode=pl.Buffered(3) on this (dominant) stream only.
                pl.BlockSpec((tm, tk), lambda i, k: (i, k)),       # A 0/1 int8 tile
                hn_spec,                                           # H @ W_neigh (bf16)
                pl.BlockSpec((tm, fout), lambda i, k: (i, 0)),     # H @ W_self + b
                pl.BlockSpec((tm, 1), lambda i, k: (i, 0)),        # 1/deg
            ],
            out_specs=pl.BlockSpec((tm, fout), lambda i, k: (i, 0)),
            scratch_shapes=[pltpu.VMEM((tm, fout), jnp.float32)],
        ),
        compiler_params=pltpu.CompilerParams(
            dimension_semantics=("parallel", "arbitrary"),
            vmem_limit_bytes=vmem_limit,
        ),
    )(a_i8, hn, s, dinv)


def graphsage_forward(x, adj, params, *, tm=1024, tk=1024):
    """x: [N, in_feats] f32 node features, adj: [N, N] 0/1 in-neighbor adjacency."""
    n = x.shape[0]
    h_feats = params["ws1"].shape[1]
    num_classes = params["wl"].shape[1]
    h_p = _round_up(h_feats, 128)
    c_p = _round_up(num_classes, 128)

    # --- Tile / padding selection ---------------------------------------------------
    n128 = _round_up(n, 128)
    tm = min(tm, n128)
    tk = min(tk, n128)
    n_pad = _round_up(n, math.lcm(tm, tk))
    # v7x megacore: keep >=2 row tiles on the 'parallel' axis when the graph allows.
    if n_pad // tm < 2 and tm >= 256:
        tm //= 2
    vmem_limit = _vmem_limit_bytes()

    # --- Graph operands (0/1 int8 adjacency + f32 degree inverse) --------------------
    adj = adj.astype(jnp.float32)
    deg = jnp.sum(adj, axis=1, keepdims=True)
    dinv = _pad2(1.0 / jnp.maximum(deg, 1.0), n_pad, 1).astype(jnp.float32)
    a_i8 = _pad2(adj.astype(jnp.int8), n_pad, n_pad)   # zero-padded rows AND columns

    # --- Layer 1: per-node transforms in the wrapper (O(N*F^2), negligible) ----------
    x32 = x.astype(jnp.float32)
    s1 = _pad2(x32 @ params["ws1"] + params["b1"], n_pad, h_p)      # f32, pad rows 0
    hn1 = _pad2(x32 @ params["wn1"], n_pad, h_p).astype(jnp.bfloat16)
    h1 = _sage_agg_layer(a_i8, hn1, s1, dinv, relu=True, tm=tm, tk=tk,
                         vmem_limit=vmem_limit)        # (n_pad, h_p) f32, pad rows 0

    # --- Layer 2 with the final Linear folded in --------------------------------------
    ws2f = _pad2(params["ws2"] @ params["wl"], h_p, c_p)
    wn2f = _pad2(params["wn2"] @ params["wl"], h_p, c_p)
    b2f = _pad2(params["b2"] @ params["wl"] + params["bl"], 1, c_p)
    # Padded rows of s2 carry b2f but only affect padded output rows (sliced off);
    # padded COLUMNS of A are zero so padded nodes never contaminate real rows.
    s2 = h1 @ ws2f + b2f
    hn2 = (h1 @ wn2f).astype(jnp.bfloat16)
    out = _sage_agg_layer(a_i8, hn2, s2, dinv, relu=False, tm=tm, tk=tk,
                          vmem_limit=vmem_limit)
    return out[:n, :num_classes]


def reference_forward(x, adj, p):
    deg = jnp.sum(adj, axis=1, keepdims=True)
    a_mean = adj / jnp.maximum(deg, 1.0)
    n1 = a_mean @ x
    h1 = jnp.maximum(x @ p["ws1"] + n1 @ p["wn1"] + p["b1"], 0.0)
    n2 = a_mean @ h1
    h2 = h1 @ p["ws2"] + n2 @ p["wn2"] + p["b2"]
    return h2 @ p["wl"] + p["bl"]


if __name__ == "__main__":
    # Small, module-consistent sizes.
    N = 16            # number of graph nodes
    in_feats = 8
    h_feats = 16
    num_classes = 8

    key = jax.random.PRNGKey(0)
    keys = jax.random.split(key, 8)

    # Node features.
    x = jax.random.normal(keys[0], (N, in_feats), dtype=jnp.float32)

    # Deterministic graph: ring (in-neighbors i-1, i+1) plus a chord. 0/1 adjacency.
    idx = jnp.arange(N)
    adj = jnp.zeros((N, N), dtype=jnp.float32)
    adj = adj.at[idx, (idx - 1) % N].set(1.0)
    adj = adj.at[idx, (idx + 1) % N].set(1.0)
    adj = adj.at[idx, (idx + 5) % N].set(1.0)

    # Deterministic parameter init (stored as [in, out]; torch would be [out, in]).
    def winit(k, shape, scale=0.1):
        return scale * jax.random.normal(k, shape, dtype=jnp.float32)

    params = {
        "ws1": winit(keys[1], (in_feats, h_feats)),
        "wn1": winit(keys[2], (in_feats, h_feats)),
        "b1":  jnp.zeros((1, h_feats), dtype=jnp.float32),
        "ws2": winit(keys[3], (h_feats, num_classes)),
        "wn2": winit(keys[4], (h_feats, num_classes)),
        "b2":  jnp.zeros((1, num_classes), dtype=jnp.float32),
        "wl":  winit(keys[5], (num_classes, num_classes)),
        "bl":  winit(keys[6], (1, num_classes)),
    }

    out = graphsage_forward(x, adj, params)
    out = jax.block_until_ready(out)

    ref = reference_forward(x, adj, params)
    assert out.shape == (N, num_classes)
    # bf16 Hn operand (f32 accumulation, exact int8 adjacency) -> relaxed tolerance.
    assert jnp.allclose(out, ref, atol=2e-2, rtol=2e-2), (
        f"max abs err {jnp.max(jnp.abs(out - ref))}")

    print("KERNEL_OK")
</pallas_src>

<mosaic_0001>
module attributes {stable_mosaic.version = 11 : i64} {
  func.func @_sage_agg_kernel(%arg0: i32, %arg1: i32, %arg2: memref<128x128xi8, #tpu.memory_space<vmem>>, %arg3: memref<128x128xbf16, #tpu.memory_space<vmem>>, %arg4: memref<128x128xf32, #tpu.memory_space<vmem>>, %arg5: memref<128x1xf32, #tpu.memory_space<vmem>>, %arg6: memref<128x128xf32, #tpu.memory_space<vmem>>, %arg7: memref<128x128xf32, #tpu.memory_space<vmem>>) attributes {dimension_semantics = [#tpu.dimension_semantics<parallel>, #tpu.dimension_semantics<arbitrary>], iteration_bounds = array<i64: 1, 1>, scalar_prefetch = 0 : i64, scratch_operands = 1 : i64, tpu.core_type = #tpu.core_type<tc>, window_params = [{transform_indices = @transform_0, window_bounds = array<i64: 128, 128>}, {pipeline_mode = #tpu.pipeline_mode<synchronous>, transform_indices = @transform_1, window_bounds = array<i64: 128, 128>}, {transform_indices = @transform_2, window_bounds = array<i64: 128, 128>}, {transform_indices = @transform_3, window_bounds = array<i64: 128, 1>}, {transform_indices = @transform_4, window_bounds = array<i64: 128, 128>}]} {
    %c0_i32 = arith.constant 0 : i32
    %0 = arith.cmpi eq, %arg1, %c0_i32 : i32
    %1 = arith.extui %0 : i1 to i32
    %c0_i32_0 = arith.constant 0 : i32
    %2 = arith.cmpi ne, %1, %c0_i32_0 : i32
    scf.if %2 {
      %cst_9 = arith.constant 0.000000e+00 : f32
      %17 = vector.broadcast %cst_9 : f32 to vector<128x128xf32>
      %c0_10 = arith.constant 0 : index
      %c0_11 = arith.constant 0 : index
      %18 = vector.load %arg7[%c0_10, %c0_11] : memref<128x128xf32, #tpu.memory_space<vmem>>, vector<128x128xf32>
      tpu.vector_store %arg7[%c0_10, %c0_11], %17 {strides = array<i32>} : memref<128x128xf32, #tpu.memory_space<vmem>>, vector<128x128xf32>,
    } else {
    }
    %c0 = arith.constant 0 : index
    %c0_1 = arith.constant 0 : index
    %3 = vector.load %arg2[%c0, %c0_1] : memref<128x128xi8, #tpu.memory_space<vmem>>, vector<128x128xi8>
    %4 = arith.sitofp %3 : vector<128x128xi8> to vector<128x128xf32>
    %5 = arith.truncf %4 : vector<128x128xf32> to vector<128x128xbf16>
    %c128_i32 = arith.constant 128 : i32
    %6 = arith.muli %arg1, %c128_i32 : i32
    %7 = tpu.assume_multiple %6, 128 : i32
    %8 = arith.index_cast %7 : i32 to index
    %c0_2 = arith.constant 0 : index
    %9 = vector.load %arg3[%8, %c0_2] : memref<128x128xbf16, #tpu.memory_space<vmem>>, vector<128x128xbf16>
    %c0_3 = arith.constant 0 : index
    %c0_4 = arith.constant 0 : index
    %10 = vector.load %arg7[%c0_3, %c0_4] : memref<128x128xf32, #tpu.memory_space<vmem>>, vector<128x128xf32>
    %cst = arith.constant dense<0.000000e+00> : vector<128x128xf32>
    %11 = tpu.matmul %5, %9, %cst {dimension_numbers = #tpu.dot_dimension_numbers<[1], [0], [0], [1], [0, 0, 1, 1], [], []>} : vector<128x128xbf16>, vector<128x128xbf16>, vector<128x128xf32> -> vector<128x128xf32>
    %12 = arith.addf %10, %11 : vector<128x128xf32>
    %c0_5 = arith.constant 0 : index
    %c0_6 = arith.constant 0 : index
    %13 = vector.load %arg7[%c0_5, %c0_6] : memref<128x128xf32, #tpu.memory_space<vmem>>, vector<128x128xf32>
    tpu.vector_store %arg7[%c0_5, %c0_6], %12 {strides = array<i32>} : memref<128x128xf32, #tpu.memory_space<vmem>>, vector<128x128xf32>,
    %c0_i32_7 = arith.constant 0 : i32
    %14 = arith.cmpi eq, %arg1, %c0_i32_7 : i32
    %15 = arith.extui %14 : i1 to i32
    %c0_i32_8 = arith.constant 0 : i32
    %16 = arith.cmpi ne, %15, %c0_i32_8 : i32
    scf.if %16 {
      %c0_9 = arith.constant 0 : index
      %c0_10 = arith.constant 0 : index
      %17 = vector.load %arg7[%c0_9, %c0_10] : memref<128x128xf32, #tpu.memory_space<vmem>>, vector<128x128xf32>
      %c0_11 = arith.constant 0 : index
      %c0_12 = arith.constant 0 : index
      %18 = vector.load %arg5[%c0_11, %c0_12] : memref<128x1xf32, #tpu.memory_space<vmem>>, vector<128x1xf32>
      %19 = vector.broadcast %18 : vector<128x1xf32> to vector<128x128xf32>
      %20 = arith.mulf %17, %19 : vector<128x128xf32>
      %c0_13 = arith.constant 0 : index
      %c0_14 = arith.constant 0 : index
      %21 = vector.load %arg4[%c0_13, %c0_14] : memref<128x128xf32, #tpu.memory_space<vmem>>, vector<128x128xf32>
      %22 = arith.addf %20, %21 : vector<128x128xf32>
      %cst_15 = arith.constant 0.000000e+00 : f32
      %23 = vector.broadcast %cst_15 : f32 to vector<128x128xf32>
      %24 = arith.maximumf %22, %23 : vector<128x128xf32>
      %c0_16 = arith.constant 0 : index
      %c0_17 = arith.constant 0 : index
      %25 = vector.load %arg6[%c0_16, %c0_17] : memref<128x128xf32, #tpu.memory_space<vmem>>, vector<128x128xf32>
      tpu.vector_store %arg6[%c0_16, %c0_17], %24 {strides = array<i32>} : memref<128x128xf32, #tpu.memory_space<vmem>>, vector<128x128xf32>,
    } else {
    }
    return
  }
  func.func @transform_0(%arg0: i32, %arg1: i32) -> (i32, i32) {
    %c0_i32 = arith.constant 0 : i32
    return %arg0, %arg1 : i32, i32
  }
  func.func @transform_1(%arg0: i32, %arg1: i32) -> (i32, i32) {
    %c0_i32 = arith.constant 0 : i32
    %c0_i32_0 = arith.constant 0 : i32
    %c0_i32_1 = arith.constant 0 : i32
    return %c0_i32, %c0_i32_0 : i32, i32
  }
  func.func @transform_2(%arg0: i32, %arg1: i32) -> (i32, i32) {
    %c0_i32 = arith.constant 0 : i32
    %c0_i32_0 = arith.constant 0 : i32
    return %arg0, %c0_i32 : i32, i32
  }
  func.func @transform_3(%arg0: i32, %arg1: i32) -> (i32, i32) {
    %c0_i32 = arith.constant 0 : i32
    %c0_i32_0 = arith.constant 0 : i32
    return %arg0, %c0_i32 : i32, i32
  }
  func.func @transform_4(%arg0: i32, %arg1: i32) -> (i32, i32) {
    %c0_i32 = arith.constant 0 : i32
    %c0_i32_0 = arith.constant 0 : i32
    return %arg0, %c0_i32 : i32, i32
  }
}

</mosaic_0001>

<llo_original>
// kernel: tpu_custom_call.1
$region0: #{tpu_custom_call.1}
  #allocation0 [shape = 'u32[]', space=smem, size = 0x4, offset = 0x4, fixed_abs, tag = 'smem constant byte address 0x4 - core index']
  #allocation1 [shape = 'u32[72,128]{1,0:T(1,128)}', space=vmem, size = 0x9000, scoped, tag = 'internal scratch']
  #allocation2 [shape = 'f32[128,128]{1,0:T(8,128)}', space=vmem, size = 0x10000, scoped, tag = 'scratch operand']
  %s0 = inlined_call_operand.hbm [shape: s8[128,128], index: 0, kind: input, shape index: {}]
  %s1 = inlined_call_operand.hbm [shape: bf16[128,128], index: 1, kind: input, shape index: {}]
  %s2 = inlined_call_operand.vmem [shape: f32[128,128], index: 2, kind: input, shape index: {}]
  %s3 = inlined_call_operand.vmem [shape: f32[128,1], index: 3, kind: input, shape index: {}]
  %s4 = inlined_call_operand.hbm [shape: f32[128,128], index: 4, kind: output, shape index: {}]
  %s5 = sld [smem:[#allocation0]]
  $region42: #{tpu_custom_call.1} parent=0
    _
  %s7 = ssub.s32 1, %s5
  %s8 = scalar_select 0, %s7, %s5
  $region1: #{tpu_custom_call.1} parent=0
    #allocation3 [shape = 'u8[16384]{0}', space=vmem, size = 0x4000, scoped, tag = 'input window, operand 0, single buffered']
    #allocation4 [shape = 's32[1]{0}', space=sflag, size = 0x4, scoped, tag = 'scoped memory for tpu_custom_call.1']
    #allocation5 [shape = 's32[1]{0}', space=sflag, size = 0x4, scoped, tag = 'scoped memory for tpu_custom_call.1']
    #allocation6 [shape = 'u8[32768]{0}', space=vmem, size = 0x8000, scoped, tag = 'input window, operand 1, single buffered']
    #allocation7 [shape = 's32[1]{0}', space=sflag, size = 0x4, scoped, tag = 'scoped memory for tpu_custom_call.1']
    #allocation8 [shape = 'u8[65536]{0}', space=vmem, size = 0x10000, scoped, tag = 'output window, operand 0, single buffered']
    %9 = vsyncpa [#allocation4], 0
    %10 = vsyncpa [#allocation7], 0
    %11 = vsyncpa [#allocation5], 0
    // Predicated region
    $region2: #{tpu_custom_call.1} parent=1 // pred_check
      _
    $region3: #{tpu_custom_call.1} parent=1 // pred_check_branch
      %13 = sbr.rel (0) target = $region5
    $region4: #{tpu_custom_call.1} parent=1 // pred_region
      %15 = vsyncadd [#allocation4], 0
      %s16 = sshll.u32 %s0, 4
      %s17 = int_to_ptr.hbm [resolvable:$true] %s16
      %s18 = sshll.u32 [#allocation3], 4
      %s19 = int_to_ptr.vmem [resolvable:$true] %s18
      %24 = dma.hbm_to_vmem [thread:$0]  %s17, 512, %s19, [#allocation4], 128, 128, 8
    $region5: #{tpu_custom_call.1} parent=1 // pred_fallthru
      _
    // Predicated region
    $region6: #{tpu_custom_call.1} parent=1 // pred_check
      _
    $region7: #{tpu_custom_call.1} parent=1 // pred_check_branch
      %26 = sbr.rel (0) target = $region9
    $region8: #{tpu_custom_call.1} parent=1 // pred_region
      %28 = vsyncadd [#allocation7], 0
      %s29 = sshll.u32 %s1, 4
      %s30 = int_to_ptr.hbm [resolvable:$true] %s29
      %s31 = sshll.u32 [#allocation6], 4
      %s32 = int_to_ptr.vmem [resolvable:$true] %s31
      %37 = dma.hbm_to_vmem [thread:$0]  %s30, 1024, %s32, [#allocation7], 64, 64, 4
    $region9: #{tpu_custom_call.1} parent=1 // pred_fallthru
      _
    // Predicated region
    $region10: #{tpu_custom_call.1} parent=1 // pred_check
      _
    $region11: #{tpu_custom_call.1} parent=1 // pred_check_branch
      %39 = sbr.rel (0) target = $region13
    $region12: #{tpu_custom_call.1} parent=1 // pred_region
      _
    $region13: #{tpu_custom_call.1} parent=1 // pred_fallthru
      _
    // Predicated region
    $region14: #{tpu_custom_call.1} parent=1 // pred_check
      _
    $region15: #{tpu_custom_call.1} parent=1 // pred_check_branch
      %41 = sbr.rel (0) target = $region17
    $region16: #{tpu_custom_call.1} parent=1 // pred_region
      _
    $region17: #{tpu_custom_call.1} parent=1 // pred_fallthru
      _
    // Predicated region
    $region18: #{tpu_custom_call.1} parent=1 // pred_check
      _
    $region19: #{tpu_custom_call.1} parent=1 // pred_check_branch
      %43 = sbr.rel (0) target = $region21
    $region20: #{tpu_custom_call.1} parent=1 // pred_region
      %45 = dma.done [#allocation4], 512
    $region21: #{tpu_custom_call.1} parent=1 // pred_fallthru
      _
    // Predicated region
    $region22: #{tpu_custom_call.1} parent=1 // pred_check
      _
    $region23: #{tpu_custom_call.1} parent=1 // pred_check_branch
      %47 = sbr.rel (0) target = $region25
    $region24: #{tpu_custom_call.1} parent=1 // pred_region
      %49 = dma.done [#allocation7], 1024
    $region25: #{tpu_custom_call.1} parent=1 // pred_fallthru
      _
    %p50 = scmp.eq.s32.totalorder 0, 0
    // Predicated region
    $region26: #{tpu_custom_call.1} parent=1 // pred_check
      %p51 = pneg %p50
    $region27: #{tpu_custom_call.1} parent=1 // pred_check_branch
      %53 = sbr.rel (%p51) target = $region29
    $region28: #{tpu_custom_call.1} parent=1 // pred_region
      %54 = vst [vmem:[#allocation2] sm:$0xff] 0.0
      %55 = vst [vmem:[#allocation2 + $0x8] sm:$0xff] 0.0
      %56 = vst [vmem:[#allocation2 + $0x10] sm:$0xff] 0.0
      %57 = vst [vmem:[#allocation2 + $0x18] sm:$0xff] 0.0
      %58 = vst [vmem:[#allocation2 + $0x20] sm:$0xff] 0.0
      %59 = vst [vmem:[#allocation2 + $0x28] sm:$0xff] 0.0
      %60 = vst [vmem:[#allocation2 + $0x30] sm:$0xff] 0.0
      %61 = vst [vmem:[#allocation2 + $0x38] sm:$0xff] 0.0
      %62 = vst [vmem:[#allocation2 + $0x40] sm:$0xff] 0.0
      %63 = vst [vmem:[#allocation2 + $0x48] sm:$0xff] 0.0
      %64 = vst [vmem:[#allocation2 + $0x50] sm:$0xff] 0.0
      %65 = vst [vmem:[#allocation2 + $0x58] sm:$0xff] 0.0
      %66 = vst [vmem:[#allocation2 + $0x60] sm:$0xff] 0.0
      %67 = vst [vmem:[#allocation2 + $0x68] sm:$0xff] 0.0
      %68 = vst [vmem:[#allocation2 + $0x70] sm:$0xff] 0.0
      %69 = vst [vmem:[#allocation2 + $0x78] sm:$0xff] 0.0
    $region29: #{tpu_custom_call.1} parent=1 // pred_fallthru
      _
    %v70 = vld [vmem:[#allocation3] sm:$0xff]
    %v71 = vld [vmem:[#allocation3 + $0x8] sm:$0xff]
    %v72 = vld [vmem:[#allocation3 + $0x10] sm:$0xff]
    %v73 = vld [vmem:[#allocation3 + $0x18] sm:$0xff]
    %v74 = vunpack.c.0.s8 %v70
    %v75 = vunpack.c.1.s8 %v70
    %v76 = vunpack.c.2.s8 %v70
    %v77 = vunpack.c.3.s8 %v70
    %v78 = vunpack.c.0.s8 %v71
    %v79 = vunpack.c.1.s8 %v71
    %v80 = vunpack.c.2.s8 %v71
    %v81 = vunpack.c.3.s8 %v71
    %v82 = vunpack.c.0.s8 %v72
    %v83 = vunpack.c.1.s8 %v72
    %v84 = vunpack.c.2.s8 %v72
    %v85 = vunpack.c.3.s8 %v72
    %v86 = vunpack.c.0.s8 %v73
    %v87 = vunpack.c.1.s8 %v73
    %v88 = vunpack.c.2.s8 %v73
    %v89 = vunpack.c.3.s8 %v73
    %v90 = vcvt.s32.f32 %v74
    %v91 = vcvt.s32.f32 %v75
    %v92 = vcvt.s32.f32 %v76
    %v93 = vcvt.s32.f32 %v77
    %v94 = vcvt.s32.f32 %v78
    %v95 = vcvt.s32.f32 %v79
    %v96 = vcvt.s32.f32 %v80
    %v97 = vcvt.s32.f32 %v81
    %v98 = vcvt.s32.f32 %v82
    %v99 = vcvt.s32.f32 %v83
    %v100 = vcvt.s32.f32 %v84
    %v101 = vcvt.s32.f32 %v85
    %v102 = vcvt.s32.f32 %v86
    %v103 = vcvt.s32.f32 %v87
    %v104 = vcvt.s32.f32 %v88
    %v105 = vcvt.s32.f32 %v89
    %v106 = vpack.c.bf16 %v91, %v90
    %v107 = vpack.c.bf16 %v93, %v92
    %v108 = vpack.c.bf16 %v95, %v94
    %v109 = vpack.c.bf16 %v97, %v96
    %v110 = vpack.c.bf16 %v99, %v98
    %v111 = vpack.c.bf16 %v101, %v100
    %v112 = vpack.c.bf16 %v103, %v102
    %v113 = vpack.c.bf16 %v105, %v104
    %s114 = smul.u32 0, 128
    %s115 = sshra.s32 %s114, 3
    %s116 = sand.u32 %s114, 7
    %s117 = smul.addr %s115, 4
    %s118 = scalar_lea.vmem [#allocation6], %s117
    %v119 = vld [vmem:[%s118] sm:$0xf]
    %v120 = vld [vmem:[%s118 + $0x4] sm:$0xf]
    %v121 = vld [vmem:[%s118 + $0x8] sm:$0xf]
    %v122 = vld [vmem:[%s118 + $0xc] sm:$0xf]
    %v123 = vld [vmem:[%s118 + $0x10] sm:$0xf]
    %v124 = vld [vmem:[%s118 + $0x14] sm:$0xf]
    %v125 = vld [vmem:[%s118 + $0x18] sm:$0xf]
    %v126 = vld [vmem:[%s118 + $0x1c] sm:$0xf]
    %v127 = vld [vmem:[%s118 + $0x20] sm:$0xf]
    %v128 = vld [vmem:[%s118 + $0x24] sm:$0xf]
    %v129 = vld [vmem:[%s118 + $0x28] sm:$0xf]
    %v130 = vld [vmem:[%s118 + $0x2c] sm:$0xf]
    %v131 = vld [vmem:[%s118 + $0x30] sm:$0xf]
    %v132 = vld [vmem:[%s118 + $0x34] sm:$0xf]
    %v133 = vld [vmem:[%s118 + $0x38] sm:$0xf]
    %v134 = vld [vmem:[%s118 + $0x3c] sm:$0xf]
    %v135 = vld [vmem:[#allocation2] sm:$0xff]
    %v136 = vld [vmem:[#allocation2 + $0x8] sm:$0xff]
    %v137 = vld [vmem:[#allocation2 + $0x10] sm:$0xff]
    %v138 = vld [vmem:[#allocation2 + $0x18] sm:$0xff]
    %v139 = vld [vmem:[#allocation2 + $0x20] sm:$0xff]
    %v140 = vld [vmem:[#allocation2 + $0x28] sm:$0xff]
    %v141 = vld [vmem:[#allocation2 + $0x30] sm:$0xff]
    %v142 = vld [vmem:[#allocation2 + $0x38] sm:$0xff]
    %v143 = vld [vmem:[#allocation2 + $0x40] sm:$0xff]
    %v144 = vld [vmem:[#allocation2 + $0x48] sm:$0xff]
    %v145 = vld [vmem:[#allocation2 + $0x50] sm:$0xff]
    %v146 = vld [vmem:[#allocation2 + $0x58] sm:$0xff]
    %v147 = vld [vmem:[#allocation2 + $0x60] sm:$0xff]
    %v148 = vld [vmem:[#allocation2 + $0x68] sm:$0xff]
    %v149 = vld [vmem:[#allocation2 + $0x70] sm:$0xff]
    %v150 = vld [vmem:[#allocation2 + $0x78] sm:$0xff]
    %v167 = vunpack.c.l.b16 %v119
    %v168 = vunpack.c.l.b16 %v120
    %v169 = vunpack.c.l.b16 %v121
    %v170 = vunpack.c.l.b16 %v122
    %v171 = vunpack.c.l.b16 %v123
    %v172 = vunpack.c.l.b16 %v124
    %v173 = vunpack.c.l.b16 %v125
    %v174 = vunpack.c.l.b16 %v126
    %v175 = vunpack.c.l.b16 %v127
    %v176 = vunpack.c.l.b16 %v128
    %v177 = vunpack.c.l.b16 %v129
    %v178 = vunpack.c.l.b16 %v130
    %v179 = vunpack.c.l.b16 %v131
    %v180 = vunpack.c.l.b16 %v132
    %v181 = vunpack.c.l.b16 %v133
    %v182 = vunpack.c.l.b16 %v134
    %v183 = vpack.c.b16 %v168, %v167
    %v184 = vpack.c.b16 %v170, %v169
    %v185 = vpack.c.b16 %v172, %v171
    %v186 = vpack.c.b16 %v174, %v173
    %v187 = vpack.c.b16 %v176, %v175
    %v188 = vpack.c.b16 %v178, %v177
    %v189 = vpack.c.b16 %v180, %v179
    %v190 = vpack.c.b16 %v182, %v181
    %199 = vmatpush.bf16.msra.mxu0 %v190
    %200 = vmatpush.bf16.msra.mxu0 %v189
    %201 = vmatpush.bf16.msra.mxu0 %v188
    %202 = vmatpush.bf16.msra.mxu0 %v187
    %203 = vmatpush.bf16.msra.mxu0 %v186
    %204 = vmatpush.bf16.msra.mxu0 %v185
    %205 = vmatpush.bf16.msra.mxu0 %v184
    %206 = vmatpush.bf16.msra.mxu0 %v183
    %207 = vmatmul.bf16.gmra.mxu0 %v106
    %v208 = vpop.f32.mrf.mxu0
    %v209 = vadd.f32 0.0, %v208
    %v210 = vpop.f32.mrf.mxu0
    %v211 = vadd.f32 0.0, %v210
    %212 = vmatmul.bf16.gmra.mxu0 %v107
    %v213 = vpop.f32.mrf.mxu0
    %v214 = vadd.f32 0.0, %v213
    %v215 = vpop.f32.mrf.mxu0
    %v216 = vadd.f32 0.0, %v215
    %217 = vmatmul.bf16.gmra.mxu0 %v108
    %v218 = vpop.f32.mrf.mxu0
    %v219 = vadd.f32 0.0, %v218
    %v220 = vpop.f32.mrf.mxu0
    %v221 = vadd.f32 0.0, %v220
    %222 = vmatmul.bf16.gmra.mxu0 %v109
    %v223 = vpop.f32.mrf.mxu0
    %v224 = vadd.f32 0.0, %v223
    %v225 = vpop.f32.mrf.mxu0
    %v226 = vadd.f32 0.0, %v225
    %227 = vmatmul.bf16.gmra.mxu0 %v110
    %v228 = vpop.f32.mrf.mxu0
    %v229 = vadd.f32 0.0, %v228
    %v230 = vpop.f32.mrf.mxu0
    %v231 = vadd.f32 0.0, %v230
    %232 = vmatmul.bf16.gmra.mxu0 %v111
    %v233 = vpop.f32.mrf.mxu0
    %v234 = vadd.f32 0.0, %v233
    %v235 = vpop.f32.mrf.mxu0
    %v236 = vadd.f32 0.0, %v235
    %237 = vmatmul.bf16.gmra.mxu0 %v112
    %v238 = vpop.f32.mrf.mxu0
    %v239 = vadd.f32 0.0, %v238
    %v240 = vpop.f32.mrf.mxu0
    %v241 = vadd.f32 0.0, %v240
    %242 = vmatmul.bf16.gmra.mxu0 %v113
    %v243 = vpop.f32.mrf.mxu0
    %v244 = vadd.f32 0.0, %v243
    %v245 = vpop.f32.mrf.mxu0
    %v246 = vadd.f32 0.0, %v245
    %247 = vdwg.mxu0
    %v248 = vadd.f32 %v135, %v209
    %v249 = vadd.f32 %v136, %v211
    %v250 = vadd.f32 %v137, %v214
    %v251 = vadd.f32 %v138, %v216
    %v252 = vadd.f32 %v139, %v219
    %v253 = vadd.f32 %v140, %v221
    %v254 = vadd.f32 %v141, %v224
    %v255 = vadd.f32 %v142, %v226
    %v256 = vadd.f32 %v143, %v229
    %v257 = vadd.f32 %v144, %v231
    %v258 = vadd.f32 %v145, %v234
    %v259 = vadd.f32 %v146, %v236
    %v260 = vadd.f32 %v147, %v239
    %v261 = vadd.f32 %v148, %v241
    %v262 = vadd.f32 %v149, %v244
    %v263 = vadd.f32 %v150, %v246
    %264 = vst [vmem:[#allocation2] sm:$0xff] %v248
    %265 = vst [vmem:[#allocation2 + $0x8] sm:$0xff] %v249
    %266 = vst [vmem:[#allocation2 + $0x10] sm:$0xff] %v250
    %267 = vst [vmem:[#allocation2 + $0x18] sm:$0xff] %v251
    %268 = vst [vmem:[#allocation2 + $0x20] sm:$0xff] %v252
    %269 = vst [vmem:[#allocation2 + $0x28] sm:$0xff] %v253
    %270 = vst [vmem:[#allocation2 + $0x30] sm:$0xff] %v254
    %271 = vst [vmem:[#allocation2 + $0x38] sm:$0xff] %v255
    %272 = vst [vmem:[#allocation2 + $0x40] sm:$0xff] %v256
    %273 = vst [vmem:[#allocation2 + $0x48] sm:$0xff] %v257
    %274 = vst [vmem:[#allocation2 + $0x50] sm:$0xff] %v258
    %275 = vst [vmem:[#allocation2 + $0x58] sm:$0xff] %v259
    %276 = vst [vmem:[#allocation2 + $0x60] sm:$0xff] %v260
    %277 = vst [vmem:[#allocation2 + $0x68] sm:$0xff] %v261
    %278 = vst [vmem:[#allocation2 + $0x70] sm:$0xff] %v262
    %279 = vst [vmem:[#allocation2 + $0x78] sm:$0xff] %v263
    // Predicated region
    $region30: #{tpu_custom_call.1} parent=1 // pred_check
      %p280 = pneg %p50
    $region31: #{tpu_custom_call.1} parent=1 // pred_check_branch
      %282 = sbr.rel (%p280) target = $region33
    $region32: #{tpu_custom_call.1} parent=1 // pred_region
      %v283 = vld [vmem:[#allocation2] sm:$0xff]
      %v284 = vld [vmem:[#allocation2 + $0x8] sm:$0xff]
      %v285 = vld [vmem:[#allocation2 + $0x10] sm:$0xff]
      %v286 = vld [vmem:[#allocation2 + $0x18] sm:$0xff]
      %v287 = vld [vmem:[#allocation2 + $0x20] sm:$0xff]
      %v288 = vld [vmem:[#allocation2 + $0x28] sm:$0xff]
      %v289 = vld [vmem:[#allocation2 + $0x30] sm:$0xff]
      %v290 = vld [vmem:[#allocation2 + $0x38] sm:$0xff]
      %v291 = vld [vmem:[#allocation2 + $0x40] sm:$0xff]
      %v292 = vld [vmem:[#allocation2 + $0x48] sm:$0xff]
      %v293 = vld [vmem:[#allocation2 + $0x50] sm:$0xff]
      %v294 = vld [vmem:[#allocation2 + $0x58] sm:$0xff]
      %v295 = vld [vmem:[#allocation2 + $0x60] sm:$0xff]
      %v296 = vld [vmem:[#allocation2 + $0x68] sm:$0xff]
      %v297 = vld [vmem:[#allocation2 + $0x70] sm:$0xff]
      %v298 = vld [vmem:[#allocation2 + $0x78] sm:$0xff]
      %v299 = vld [vmem:[%s3] sm:$0xff]
      %v300 = vld [vmem:[%s3 + $0x8] sm:$0xff]
      %v301 = vld [vmem:[%s3 + $0x10] sm:$0xff]
      %v302 = vld [vmem:[%s3 + $0x18] sm:$0xff]
      %v303 = vld [vmem:[%s3 + $0x20] sm:$0xff]
      %v304 = vld [vmem:[%s3 + $0x28] sm:$0xff]
      %v305 = vld [vmem:[%s3 + $0x30] sm:$0xff]
      %v306 = vld [vmem:[%s3 + $0x38] sm:$0xff]
      %v307 = vld [vmem:[%s3 + $0x40] sm:$0xff]
      %v308 = vld [vmem:[%s3 + $0x48] sm:$0xff]
      %v309 = vld [vmem:[%s3 + $0x50] sm:$0xff]
      %v310 = vld [vmem:[%s3 + $0x58] sm:$0xff]
      %v311 = vld [vmem:[%s3 + $0x60] sm:$0xff]
      %v312 = vld [vmem:[%s3 + $0x68] sm:$0xff]
      %v313 = vld [vmem:[%s3 + $0x70] sm:$0xff]
      %v314 = vld [vmem:[%s3 + $0x78] sm:$0xff]
      %316 = vset.pattern.permute.xlu0 0
      %317 = vperm.xlu0 %316, %v299
      %v318 = vpop.permute.xlu0 %317
      %321 = vset.pattern.permute.xlu0 0
      %322 = vperm.xlu0 %321, %v300
      %v323 = vpop.permute.xlu0 %322
      %326 = vset.pattern.permute.xlu0 0
      %327 = vperm.xlu0 %326, %v301
      %v328 = vpop.permute.xlu0 %327
      %331 = vset.pattern.permute.xlu0 0
      %332 = vperm.xlu0 %331, %v302
      %v333 = vpop.permute.xlu0 %332
      %336 = vset.pattern.permute.xlu0 0
      %337 = vperm.xlu0 %336, %v303
      %v338 = vpop.permute.xlu0 %337
      %341 = vset.pattern.permute.xlu0 0
      %342 = vperm.xlu0 %341, %v304
      %v343 = vpop.permute.xlu0 %342
      %346 = vset.pattern.permute.xlu0 0
      %347 = vperm.xlu0 %346, %v305
      %v348 = vpop.permute.xlu0 %347
      %351 = vset.pattern.permute.xlu0 0
      %352 = vperm.xlu0 %351, %v306
      %v353 = vpop.permute.xlu0 %352
      %356 = vset.pattern.permute.xlu0 0
      %357 = vperm.xlu0 %356, %v307
      %v358 = vpop.permute.xlu0 %357
      %361 = vset.pattern.permute.xlu0 0
      %362 = vperm.xlu0 %361, %v308
      %v363 = vpop.permute.xlu0 %362
      %366 = vset.pattern.permute.xlu0 0
      %367 = vperm.xlu0 %366, %v309
      %v368 = vpop.permute.xlu0 %367
      %371 = vset.pattern.permute.xlu0 0
      %372 = vperm.xlu0 %371, %v310
      %v373 = vpop.permute.xlu0 %372
      %376 = vset.pattern.permute.xlu0 0
      %377 = vperm.xlu0 %376, %v311
      %v378 = vpop.permute.xlu0 %377
      %381 = vset.pattern.permute.xlu0 0
      %382 = vperm.xlu0 %381, %v312
      %v383 = vpop.permute.xlu0 %382
      %386 = vset.pattern.permute.xlu0 0
      %387 = vperm.xlu0 %386, %v313
      %v388 = vpop.permute.xlu0 %387
      %391 = vset.pattern.permute.xlu0 0
      %392 = vperm.xlu0 %391, %v314
      %v393 = vpop.permute.xlu0 %392
      %v395 = vmul.f32 %v283, %v318
      %v396 = vmul.f32 %v284, %v323
      %v397 = vmul.f32 %v285, %v328
      %v398 = vmul.f32 %v286, %v333
      %v399 = vmul.f32 %v287, %v338
      %v400 = vmul.f32 %v288, %v343
      %v401 = vmul.f32 %v289, %v348
      %v402 = vmul.f32 %v290, %v353
      %v403 = vmul.f32 %v291, %v358
      %v404 = vmul.f32 %v292, %v363
      %v405 = vmul.f32 %v293, %v368
      %v406 = vmul.f32 %v294, %v373
      %v407 = vmul.f32 %v295, %v378
      %v408 = vmul.f32 %v296, %v383
      %v409 = vmul.f32 %v297, %v388
      %v410 = vmul.f32 %v298, %v393
      %v411 = vld [vmem:[%s2] sm:$0xff]
      %v412 = vld [vmem:[%s2 + $0x8] sm:$0xff]
      %v413 = vld [vmem:[%s2 + $0x10] sm:$0xff]
      %v414 = vld [vmem:[%s2 + $0x18] sm:$0xff]
      %v415 = vld [vmem:[%s2 + $0x20] sm:$0xff]
      %v416 = vld [vmem:[%s2 + $0x28] sm:$0xff]
      %v417 = vld [vmem:[%s2 + $0x30] sm:$0xff]
      %v418 = vld [vmem:[%s2 + $0x38] sm:$0xff]
      %v419 = vld [vmem:[%s2 + $0x40] sm:$0xff]
      %v420 = vld [vmem:[%s2 + $0x48] sm:$0xff]
      %v421 = vld [vmem:[%s2 + $0x50] sm:$0xff]
      %v422 = vld [vmem:[%s2 + $0x58] sm:$0xff]
      %v423 = vld [vmem:[%s2 + $0x60] sm:$0xff]
      %v424 = vld [vmem:[%s2 + $0x68] sm:$0xff]
      %v425 = vld [vmem:[%s2 + $0x70] sm:$0xff]
      %v426 = vld [vmem:[%s2 + $0x78] sm:$0xff]
      %v427 = vadd.f32 %v395, %v411
      %v428 = vadd.f32 %v396, %v412
      %v429 = vadd.f32 %v397, %v413
      %v430 = vadd.f32 %v398, %v414
      %v431 = vadd.f32 %v399, %v415
      %v432 = vadd.f32 %v400, %v416
      %v433 = vadd.f32 %v401, %v417
      %v434 = vadd.f32 %v402, %v418
      %v435 = vadd.f32 %v403, %v419
      %v436 = vadd.f32 %v404, %v420
      %v437 = vadd.f32 %v405, %v421
      %v438 = vadd.f32 %v406, %v422
      %v439 = vadd.f32 %v407, %v423
      %v440 = vadd.f32 %v408, %v424
      %v441 = vadd.f32 %v409, %v425
      %v442 = vadd.f32 %v410, %v426
      %v443 = vmax.f32 %v427, 0.0
      %v444 = vmax.f32 %v428, 0.0
      %v445 = vmax.f32 %v429, 0.0
      %v446 = vmax.f32 %v430, 0.0
      %v447 = vmax.f32 %v431, 0.0
      %v448 = vmax.f32 %v432, 0.0
      %v449 = vmax.f32 %v433, 0.0
      %v450 = vmax.f32 %v434, 0.0
      %v451 = vmax.f32 %v435, 0.0
      %v452 = vmax.f32 %v436, 0.0
      %v453 = vmax.f32 %v437, 0.0
      %v454 = vmax.f32 %v438, 0.0
      %v455 = vmax.f32 %v439, 0.0
      %v456 = vmax.f32 %v440, 0.0
      %v457 = vmax.f32 %v441, 0.0
      %v458 = vmax.f32 %v442, 0.0
      %459 = vst [vmem:[#allocation8] sm:$0xff] %v443
      %460 = vst [vmem:[#allocation8 + $0x8] sm:$0xff] %v444
      %461 = vst [vmem:[#allocation8 + $0x10] sm:$0xff] %v445
      %462 = vst [vmem:[#allocation8 + $0x18] sm:$0xff] %v446
      %463 = vst [vmem:[#allocation8 + $0x20] sm:$0xff] %v447
      %464 = vst [vmem:[#allocation8 + $0x28] sm:$0xff] %v448
      %465 = vst [vmem:[#allocation8 + $0x30] sm:$0xff] %v449
      %466 = vst [vmem:[#allocation8 + $0x38] sm:$0xff] %v450
      %467 = vst [vmem:[#allocation8 + $0x40] sm:$0xff] %v451
      %468 = vst [vmem:[#allocation8 + $0x48] sm:$0xff] %v452
      %469 = vst [vmem:[#allocation8 + $0x50] sm:$0xff] %v453
      %470 = vst [vmem:[#allocation8 + $0x58] sm:$0xff] %v454
      %471 = vst [vmem:[#allocation8 + $0x60] sm:$0xff] %v455
      %472 = vst [vmem:[#allocation8 + $0x68] sm:$0xff] %v456
      %473 = vst [vmem:[#allocation8 + $0x70] sm:$0xff] %v457
      %474 = vst [vmem:[#allocation8 + $0x78] sm:$0xff] %v458
    $region33: #{tpu_custom_call.1} parent=1 // pred_fallthru
      _
    // Predicated region
    $region34: #{tpu_custom_call.1} parent=1 // pred_check
      _
    $region35: #{tpu_custom_call.1} parent=1 // pred_check_branch
      %476 = sbr.rel (0) target = $region37
    $region36: #{tpu_custom_call.1} parent=1 // pred_region
      %478 = vsyncadd [#allocation5], 0
      %s479 = sshll.u32 [#allocation8], 4
      %s480 = int_to_ptr.vmem [resolvable:$true] %s479
      %s481 = sshll.u32 %s4, 4
      %s482 = int_to_ptr.hbm [resolvable:$true] %s481
      %487 = dma.vmem_to_hbm [thread:$0]  %s480, 2048, %s482, [#allocation5], 128, 128, 8
    $region37: #{tpu_custom_call.1} parent=1 // pred_fallthru
      _
    // Predicated region
    $region38: #{tpu_custom_call.1} parent=1 // pred_check
      _
    $region39: #{tpu_custom_call.1} parent=1 // pred_check_branch
      %489 = sbr.rel (0) target = $region41
    $region40: #{tpu_custom_call.1} parent=1 // pred_region
      %491 = dma.done [#allocation5], 2048
    $region41: #{tpu_custom_call.1} parent=1 // pred_fallthru
      _
    %492 = vsyncpa [#allocation4], 1
    %493 = vsyncpa [#allocation7], 1
    %494 = vsyncpa [#allocation5], 1

</llo_original>
